<compile_context>
chip_gen: v6e
topology: v6e:2x2x1
jax: 0.10.0
libtpu: 0.0.40
codegen_flags: <defaults>
</compile_context>

<pallas_src>
import numpy as np
import jax
import jax.numpy as jnp
from jax import lax
from jax.experimental import pallas as pl
from jax.experimental.pallas import tpu as pltpu

_LANE = 128


# ----------------------------------------------------------------------------
# Weight preprocessing (done once per weight set; exact algebra, no approx):
# fold the 1x1-conv weight through the raw-view column-sum operator.
#   sums[b, m] = sum_p v_view[b, p, m] = sum_{flat f ≡ m (mod mid)} V_flat[b, f]
#              = feat[b].reshape(C*HW) @ T_fold[:, m]
# with T_fold[k*HW + s, m] = sum_{c : (c*HW + s) % mid == m} w_conv1[c, k].
# Padded to a 128-lane multiple so the kernel output is lane-dense (#3).
# ----------------------------------------------------------------------------
def _fold_conv_weight(w1, HW, mid_pad):
    mid, C = w1.shape
    c = jnp.arange(mid)[:, None]                      # conv output channel
    s = jnp.arange(HW)[None, :]                       # spatial position
    m_of = (c * HW + s) % mid                         # raw-view column of (c, s)
    idx_s = jnp.broadcast_to(s, (mid, HW))
    upd = jnp.broadcast_to(w1[:, None, :], (mid, HW, C))
    T = jnp.zeros((HW, mid_pad, C), jnp.float32).at[idx_s, m_of].add(upd)
    return T.transpose(2, 0, 1).reshape(C * HW, mid_pad)     # (C*HW, mid_pad)


# ----------------------------------------------------------------------------
# Kernel 1 (default, fully fused collapsed path):  single grid step.
#   * 1x1 conv as C broadcast FMAs on the VPU (contraction depth 4, #12);
#     v never leaves VMEM (#1), only its sum of squares does.
#   * raw-view column sums via one lane-dense bf16 MXU matmul against the
#     precomputed fold matrix (#2/#3/#4).
# ----------------------------------------------------------------------------
def _fused_pool_kernel(featT_ref, w1_ref, featF_ref, tfold_ref,
                       sums_ref, ssq_ref):
    # featT_ref: (C, B*HW) f32    w1_ref:   (mid, C)      f32
    # featF_ref: (B, C*HW) bf16   tfold_ref:(C*HW, mid_pad) bf16
    # sums_ref:  (B, mid_pad) f32 ssq_ref:  (1, B*HW)     f32
    C = featT_ref.shape[0]
    mid = w1_ref.shape[0]
    bhw = featT_ref.shape[1]

    v = jnp.zeros((mid, bhw), jnp.float32)
    for k in range(C):                                # static, C == 4
        v = v + (jnp.broadcast_to(w1_ref[:, k:k + 1], (mid, bhw)) *
                 jnp.broadcast_to(featT_ref[k:k + 1, :], (mid, bhw)))
    # f32 sum-of-squares partials (per lane); global reduce happens in XLA.
    ssq_ref[...] = jnp.sum(v * v, axis=0, keepdims=True)

    # Raw-view column sums: one (B, C*HW) @ (C*HW, mid_pad) MXU matmul,
    # bf16 operands, f32 accumulation.  (The scrambled raw-view fold has no
    # cheap in-register form, so it is absorbed into the weight matrix.)
    sums_ref[...] = jnp.dot(featF_ref[...], tfold_ref[...],
                            preferred_element_type=jnp.float32)


# ----------------------------------------------------------------------------
# Kernel 2 (only for the optional verbatim MCB branch): 1x1 conv producing v
# in a lane-dense (mid, B*HW) slab plus the ssq partials.
# ----------------------------------------------------------------------------
def _conv_v_kernel(featT_ref, w1_ref, v_ref, ssq_ref):
    C = featT_ref.shape[0]
    mid, bhw = v_ref.shape
    v = jnp.zeros((mid, bhw), jnp.float32)
    for k in range(C):
        v = v + (jnp.broadcast_to(w1_ref[:, k:k + 1], (mid, bhw)) *
                 jnp.broadcast_to(featT_ref[k:k + 1, :], (mid, bhw)))
    v_ref[...] = v
    ssq_ref[...] = jnp.sum(v * v, axis=0, keepdims=True)


# ----------------------------------------------------------------------------
# Kernel 3 (optional verbatim MCB branch): normalization + count-sketch +
# rfft/irfft as concatenated-DFT matmuls + attention MLP + size-1 softmax +
# attention-weighted spatial sum.  Single grid step, batch folded into the
# row dim (B*HW = 128 rows) so every weight is fetched exactly once (makes
# the Buffered(1) request moot at these sizes).  Elementwise math stays f32;
# dots use bf16 operands.
#
# TODO(synk): at production mcb sizes, block the fcat/icat matmuls over an
#   "arbitrary" K grid axis (or keep rfft/irfft in XLA), add
#   pipeline_mode=pl.Buffered(1) on the constant weight specs, and replace the
#   dense c1 count-sketch matmul with its index+sign scatter form.
# ----------------------------------------------------------------------------
def _mcb_full_kernel(v_ref, inv_norm_ref, a_ref, c1_ref, fcat_ref, icat_ref,
                     wa1_ref, ba1_ref, wa2_ref, ba2_ref, out_ref):
    B = out_ref.shape[0]
    HW = v_ref.shape[0] // B
    mm = c1_ref.dtype

    v_norm = v_ref[...] * inv_norm_ref[0, 0]                           # (B*HW, mid) f32

    # image-path count-sketch projection
    y1 = jnp.dot(v_norm.astype(mm), c1_ref[...],
                 preferred_element_type=jnp.float32)                   # (B*HW, mcb)
    # torch.rfft(y1, 1) with [cos | -sin] concatenated: one matmul
    b_ri = jnp.dot(y1.astype(mm), fcat_ref[...],
                   preferred_element_type=jnp.float32)                 # (B*HW, 2K)
    # element-wise (re, im) product — exactly torch's .mul() on the (...,2)
    # rfft layout (NOT a complex multiply); a_ref is the query-path rfft row
    # pre-broadcast per batch.
    z = a_ref[...] * b_ri
    # torch.irfft(z, 1, signal_sizes=(mcb,)) with stacked [icos; isin]
    phi = jnp.dot(z.astype(mm), icat_ref[...],
                  preferred_element_type=jnp.float32)                  # (B*HW, mcb)

    # attention MLP: 1x1 conv -> ReLU -> 1x1 conv (N=1 => VPU lane reduction)
    h = jnp.maximum(
        jnp.dot(phi.astype(mm), wa1_ref[...],
                preferred_element_type=jnp.float32) + ba1_ref[...], 0.0)
    s = jnp.sum(h * wa2_ref[...], axis=1, keepdims=True) + ba2_ref[...]  # (B*HW, 1)

    # softmax over the size-1 channel axis (== 1.0 exactly, kept verbatim)
    m = jnp.max(s, axis=1, keepdims=True)
    e = jnp.exp(s - m)
    att = e / jnp.sum(e, axis=1, keepdims=True)

    weighted = v_norm * att                                            # (B*HW, mid) f32
    for b in range(B):                                                 # static, B == 2
        out_ref[b:b + 1, :] = jnp.sum(weighted[b * HW:(b + 1) * HW, :],
                                      axis=0, keepdims=True)


# ----------------------------------------------------------------------------
# Wrapper
# ----------------------------------------------------------------------------
def mcb_attention_forward(x, feat, params, *, use_mcb_path=False,
                          use_bf16_matmul=True, eps=0.0):
    B, C, H, W = feat.shape
    HW = H * W
    BHW = B * HW
    mid = params["w_conv1"].shape[0]
    mid_pad = ((mid + _LANE - 1) // _LANE) * _LANE
    mm = jnp.bfloat16 if use_bf16_matmul else jnp.float32

    feat = feat.astype(jnp.float32)
    # lane-dense (C, B*HW) slab for the conv / ssq path (layout plumbing only)
    featT = feat.reshape(B, C, HW).transpose(1, 0, 2).reshape(C, BHW)

    cparams = pltpu.CompilerParams(
        dimension_semantics=("arbitrary",),        # single step; see #11 note
        vmem_limit_bytes=48 * 1024 * 1024)         # headroom under v7x 64 MiB

    if not use_mcb_path:
        # ---- fused collapsed path: one kernel + trivial XLA epilogue ----
        featF = feat.reshape(B, C * HW)            # free raw view of feat
        tfold = _fold_conv_weight(params["w_conv1"], HW, mid_pad)
        sums_pad, ssq_row = pl.pallas_call(
            _fused_pool_kernel,
            out_shape=(jax.ShapeDtypeStruct((B, mid_pad), jnp.float32),
                       jax.ShapeDtypeStruct((1, BHW), jnp.float32)),
            grid=(1,),
            in_specs=[pl.BlockSpec((C, BHW), lambda i: (0, 0)),
                      pl.BlockSpec((mid, C), lambda i: (0, 0)),
                      pl.BlockSpec((B, C * HW), lambda i: (0, 0)),
                      pl.BlockSpec((C * HW, mid_pad), lambda i: (0, 0))],
            out_specs=(pl.BlockSpec((B, mid_pad), lambda i: (0, 0)),
                       pl.BlockSpec((1, BHW), lambda i: (0, 0))),
            compiler_params=cparams,
        )(featT, params["w_conv1"], featF.astype(mm), tfold.astype(mm))
        inv_norm = lax.rsqrt(jnp.sum(ssq_row) + eps)        # f32 norm (feedback)
        return sums_pad[:, :mid] * inv_norm

    # ---- optional verbatim MCB branch (validates the att==1 collapse) ----
    vT, ssq_row = pl.pallas_call(
        _conv_v_kernel,
        out_shape=(jax.ShapeDtypeStruct((mid, BHW), jnp.float32),
                   jax.ShapeDtypeStruct((1, BHW), jnp.float32)),
        grid=(1,),
        in_specs=[pl.BlockSpec((C, BHW), lambda i: (0, 0)),
                  pl.BlockSpec((mid, C), lambda i: (0, 0))],
        out_specs=(pl.BlockSpec((mid, BHW), lambda i: (0, 0)),
                   pl.BlockSpec((1, BHW), lambda i: (0, 0))),
        compiler_params=cparams,
    )(featT, params["w_conv1"])
    inv_norm = lax.rsqrt(jnp.sum(ssq_row) + eps).reshape(1, 1)

    # recover NCHW, then torch's raw `.view(-1, H*W, mid)` (pure reinterpret)
    v_nchw = vT.reshape(mid, B, HW).transpose(1, 0, 2)      # (B, mid, HW)
    v_rows = v_nchw.reshape(B * HW, mid)                    # raw-view rows

    mcb = params["c0"].shape[1]
    K = mcb // 2 + 1
    fcos, fnsin, icos, isin = params["dft"]
    fcat = jnp.concatenate([fcos, fnsin], axis=1)           # (mcb, 2K)
    icat = jnp.concatenate([icos, isin], axis=0)            # (2K, mcb)

    # query path (lin1 -> count-sketch -> rfft): constant over H*W, tiny GEMMs
    q = x.astype(jnp.float32) @ params["w_lin"].T + params["b_lin"]   # (B, mid)
    a_ri = (q @ params["c0"]) @ fcat                                   # (B, 2K)
    a_exp = jnp.repeat(a_ri, HW, axis=0)                               # (B*HW, 2K)

    out = pl.pallas_call(
        _mcb_full_kernel,
        out_shape=jax.ShapeDtypeStruct((B, mid), jnp.float32),
        grid=(1,),
        in_specs=[
            pl.BlockSpec((B * HW, mid), lambda i: (0, 0)),             # v rows
            pl.BlockSpec(memory_space=pltpu.MemorySpace.SMEM),         # inv_norm
            pl.BlockSpec((B * HW, 2 * K), lambda i: (0, 0)),           # query rfft rows
            pl.BlockSpec((mid, mcb), lambda i: (0, 0)),                # C1
            pl.BlockSpec((mcb, 2 * K), lambda i: (0, 0)),              # [cos | -sin]
            pl.BlockSpec((2 * K, mcb), lambda i: (0, 0)),              # [icos; isin]
            pl.BlockSpec((mcb, 512), lambda i: (0, 0)),                # att conv1 w^T
            pl.BlockSpec((1, 512), lambda i: (0, 0)),                  # att conv1 b
            pl.BlockSpec((1, 512), lambda i: (0, 0)),                  # att conv2 w row
            pl.BlockSpec((1, 1), lambda i: (0, 0)),                    # att conv2 b
        ],
        out_specs=pl.BlockSpec((B, mid), lambda i: (0, 0)),
        compiler_params=cparams,
    )(v_rows, inv_norm, a_exp,
      params["c1"].astype(mm), fcat.astype(mm), icat.astype(mm),
      params["w_att1"].T.astype(mm), params["b_att1"].reshape(1, 512),
      params["w_att2"].reshape(1, 512), params["b_att2"].reshape(1, 1))
    return out


# ----------------------------------------------------------------------------
# Deterministic parameter construction (shapes from MCBAttention.__init__)
# ----------------------------------------------------------------------------
def _dft_matrices(n):
    k = np.arange(n // 2 + 1)
    nn_ = np.arange(n)
    ang = 2.0 * np.pi * np.outer(nn_, k) / n                 # (n, K)
    fcos = np.cos(ang).astype(np.float32)
    fnsin = (-np.sin(ang)).astype(np.float32)
    w = np.full(n // 2 + 1, 2.0)
    w[0] = 1.0
    if n % 2 == 0:
        w[-1] = 1.0
    icos = (w[:, None] * np.cos(ang.T) / n).astype(np.float32)
    isin = (-w[:, None] * np.sin(ang.T) / n).astype(np.float32)
    return (jnp.asarray(fcos), jnp.asarray(fnsin),
            jnp.asarray(icos), jnp.asarray(isin))


def init_params(key, ques_feat_size, feat_size, mid_features, mcb_dim):
    ks = jax.random.split(key, 10)
    w_conv1 = jax.random.normal(ks[0], (mid_features, feat_size),
                                jnp.float32) / np.sqrt(feat_size)
    w_lin = jax.random.normal(ks[1], (mid_features, ques_feat_size),
                              jnp.float32) / np.sqrt(ques_feat_size)
    b_lin = 0.01 * jax.random.normal(ks[2], (mid_features,), jnp.float32)

    def make_c(k):
        k1, k2 = jax.random.split(k)
        cols = jax.random.randint(k1, (mid_features,), 0, mcb_dim - 1)
        signs = (2 * jax.random.randint(k2, (mid_features,), 0, 2) - 1
                 ).astype(jnp.float32)
        return jnp.zeros((mid_features, mcb_dim), jnp.float32).at[
            jnp.arange(mid_features), cols].set(signs)

    c0 = make_c(ks[3])
    c1 = make_c(ks[4])

    w_att1 = jax.random.normal(ks[5], (512, mcb_dim),
                               jnp.float32) / np.sqrt(mcb_dim)
    b_att1 = 0.01 * jax.random.normal(ks[6], (512,), jnp.float32)
    w_att2 = jax.random.normal(ks[7], (1, 512), jnp.float32) / np.sqrt(512.0)
    b_att2 = 0.01 * jax.random.normal(ks[8], (1,), jnp.float32)

    return {"w_conv1": w_conv1, "w_lin": w_lin, "b_lin": b_lin,
            "c0": c0, "c1": c1,
            "w_att1": w_att1, "b_att1": b_att1,
            "w_att2": w_att2, "b_att2": b_att2,
            "dft": _dft_matrices(mcb_dim)}


# ----------------------------------------------------------------------------
# Pure-JAX reference (correctness check only)
# ----------------------------------------------------------------------------
def reference_forward(x, feat, p):
    B, C, H, W = feat.shape
    HW = H * W
    mid = p["w_conv1"].shape[0]
    mcb = p["c0"].shape[1]
    V = jnp.einsum('oc,bchw->bohw', p["w_conv1"], feat)      # conv1 (no dropout)
    v = V.reshape(B, HW, mid)                                # raw torch .view
    v_norm = v / jnp.linalg.norm(v)
    q = x @ p["w_lin"].T + p["b_lin"]
    q_tiled = jnp.broadcast_to(q[:, None, :], (B, HW, mid)).reshape(-1, mid)
    v_mcb = v_norm.reshape(-1, mid)
    y0 = q_tiled @ p["c0"]
    y1 = v_mcb @ p["c1"]
    A = jnp.fft.rfft(y0, axis=-1)
    Bf = jnp.fft.rfft(y1, axis=-1)
    Z = A.real * Bf.real + 1j * (A.imag * Bf.imag)           # element-wise, as in torch code
    phi = jnp.fft.irfft(Z, n=mcb, axis=-1)
    att_x = phi.reshape(B, H, W, mcb).transpose(0, 3, 1, 2)
    h = jnp.maximum(jnp.einsum('oc,bchw->bohw', p["w_att1"], att_x)
                    + p["b_att1"][None, :, None, None], 0.0)
    s = (jnp.einsum('oc,bchw->bohw', p["w_att2"], h)
         + p["b_att2"][None, :, None, None])
    att = jax.nn.softmax(s, axis=1)                          # size-1 axis -> ones
    att = jnp.broadcast_to(att, (B, mid, H, W))
    vperm = v_norm.reshape(B, H, W, mid).transpose(0, 3, 1, 2)
    return jnp.sum(vperm * att, axis=(2, 3))


if __name__ == "__main__":
    B, feat_size, H, W = 2, 4, 8, 8            # B*HW = 128 -> one full lane tile
    ques_feat_size, mid_features, mcb_dim = 16, 32, 16

    key = jax.random.PRNGKey(0)
    kx, kf, kp = jax.random.split(key, 3)
    x = jax.random.normal(kx, (B, ques_feat_size), jnp.float32)
    feat = jax.random.normal(kf, (B, feat_size, H, W), jnp.float32)
    params = init_params(kp, ques_feat_size, feat_size, mid_features, mcb_dim)

    # default fused collapsed path (production path)
    out_fast = jax.block_until_ready(mcb_attention_forward(x, feat, params))
    # optional verbatim MCB path (validates the att==1 collapse)
    out_full = jax.block_until_ready(
        mcb_attention_forward(x, feat, params, use_mcb_path=True))

    ref = reference_forward(x, feat, params)
    assert out_fast.shape == (B, mid_features)
    assert out_full.shape == (B, mid_features)

    # fast path uses bf16 MXU operands -> tolerances sized for bf16 rounding
    if not bool(jnp.allclose(out_fast, ref, rtol=2e-2, atol=3e-3)):
        raise AssertionError(
            "Pallas fused-path mismatch vs reference, max abs diff = "
            f"{float(jnp.max(jnp.abs(out_fast - ref)))}")
    if not bool(jnp.allclose(out_full, ref, rtol=2e-2, atol=1e-4)):
        raise AssertionError(
            "Pallas MCB-path mismatch vs reference, max abs diff = "
            f"{float(jnp.max(jnp.abs(out_full - ref)))}")
    if not bool(jnp.allclose(out_fast, out_full, rtol=2e-2, atol=3e-3)):
        raise AssertionError(
            "fused path disagrees with verbatim MCB path, max abs diff = "
            f"{float(jnp.max(jnp.abs(out_fast - out_full)))}")
    print("KERNEL_OK")
</pallas_src>

<mosaic_0001>
module attributes {stable_mosaic.version = 11 : i64} {
  func.func @_fused_pool_kernel(%arg0: i32, %arg1: memref<4x128xf32, #tpu.memory_space<vmem>>, %arg2: memref<32x4xf32, #tpu.memory_space<vmem>>, %arg3: memref<2x256xbf16, #tpu.memory_space<vmem>>, %arg4: memref<256x128xbf16, #tpu.memory_space<vmem>>, %arg5: memref<2x128xf32, #tpu.memory_space<vmem>>, %arg6: memref<1x128xf32, #tpu.memory_space<vmem>>) attributes {dimension_semantics = [#tpu.dimension_semantics<arbitrary>], iteration_bounds = array<i64: 1>, scalar_prefetch = 0 : i64, scratch_operands = 0 : i64, tpu.core_type = #tpu.core_type<tc>, window_params = [{pipeline_mode = #tpu.pipeline_mode<synchronous>, transform_indices = @transform_0, window_bounds = array<i64: 4, 128>}, {pipeline_mode = #tpu.pipeline_mode<synchronous>, transform_indices = @transform_1, window_bounds = array<i64: 32, 4>}, {pipeline_mode = #tpu.pipeline_mode<synchronous>, transform_indices = @transform_2, window_bounds = array<i64: 2, 256>}, {pipeline_mode = #tpu.pipeline_mode<synchronous>, transform_indices = @transform_3, window_bounds = array<i64: 256, 128>}, {pipeline_mode = #tpu.pipeline_mode<synchronous>, transform_indices = @transform_4, window_bounds = array<i64: 2, 128>}, {pipeline_mode = #tpu.pipeline_mode<synchronous>, transform_indices = @transform_5, window_bounds = array<i64: 1, 128>}]} {
    %cst = arith.constant 0.000000e+00 : f32
    %0 = vector.broadcast %cst : f32 to vector<32x128xf32>
    %c0 = arith.constant 0 : index
    %c0_0 = arith.constant 0 : index
    %1 = vector.load %arg2[%c0, %c0_0] : memref<32x4xf32, #tpu.memory_space<vmem>>, vector<32x1xf32>
    %2 = vector.shape_cast %1 : vector<32x1xf32> to vector<32x1xf32>
    %3 = vector.broadcast %2 : vector<32x1xf32> to vector<32x128xf32>
    %c0_1 = arith.constant 0 : index
    %c0_2 = arith.constant 0 : index
    %4 = vector.load %arg1[%c0_1, %c0_2] : memref<4x128xf32, #tpu.memory_space<vmem>>, vector<1x128xf32>
    %5 = vector.shape_cast %4 : vector<1x128xf32> to vector<1x128xf32>
    %6 = vector.broadcast %5 : vector<1x128xf32> to vector<32x128xf32>
    %7 = arith.mulf %3, %6 : vector<32x128xf32>
    %8 = arith.addf %0, %7 : vector<32x128xf32>
    %c0_3 = arith.constant 0 : index
    %c1 = arith.constant 1 : index
    %9 = vector.load %arg2[%c0_3, %c1] : memref<32x4xf32, #tpu.memory_space<vmem>>, vector<32x1xf32>
    %10 = vector.shape_cast %9 : vector<32x1xf32> to vector<32x1xf32>
    %11 = vector.broadcast %10 : vector<32x1xf32> to vector<32x128xf32>
    %c1_4 = arith.constant 1 : index
    %c0_5 = arith.constant 0 : index
    %12 = vector.load %arg1[%c1_4, %c0_5] : memref<4x128xf32, #tpu.memory_space<vmem>>, vector<1x128xf32>
    %13 = vector.shape_cast %12 : vector<1x128xf32> to vector<1x128xf32>
    %14 = vector.broadcast %13 : vector<1x128xf32> to vector<32x128xf32>
    %15 = arith.mulf %11, %14 : vector<32x128xf32>
    %16 = arith.addf %8, %15 : vector<32x128xf32>
    %c0_6 = arith.constant 0 : index
    %c2 = arith.constant 2 : index
    %17 = vector.load %arg2[%c0_6, %c2] : memref<32x4xf32, #tpu.memory_space<vmem>>, vector<32x1xf32>
    %18 = vector.shape_cast %17 : vector<32x1xf32> to vector<32x1xf32>
    %19 = vector.broadcast %18 : vector<32x1xf32> to vector<32x128xf32>
    %c2_7 = arith.constant 2 : index
    %c0_8 = arith.constant 0 : index
    %20 = vector.load %arg1[%c2_7, %c0_8] : memref<4x128xf32, #tpu.memory_space<vmem>>, vector<1x128xf32>
    %21 = vector.shape_cast %20 : vector<1x128xf32> to vector<1x128xf32>
    %22 = vector.broadcast %21 : vector<1x128xf32> to vector<32x128xf32>
    %23 = arith.mulf %19, %22 : vector<32x128xf32>
    %24 = arith.addf %16, %23 : vector<32x128xf32>
    %c0_9 = arith.constant 0 : index
    %c3 = arith.constant 3 : index
    %25 = vector.load %arg2[%c0_9, %c3] : memref<32x4xf32, #tpu.memory_space<vmem>>, vector<32x1xf32>
    %26 = vector.shape_cast %25 : vector<32x1xf32> to vector<32x1xf32>
    %27 = vector.broadcast %26 : vector<32x1xf32> to vector<32x128xf32>
    %c3_10 = arith.constant 3 : index
    %c0_11 = arith.constant 0 : index
    %28 = vector.load %arg1[%c3_10, %c0_11] : memref<4x128xf32, #tpu.memory_space<vmem>>, vector<1x128xf32>
    %29 = vector.shape_cast %28 : vector<1x128xf32> to vector<1x128xf32>
    %30 = vector.broadcast %29 : vector<1x128xf32> to vector<32x128xf32>
    %31 = arith.mulf %27, %30 : vector<32x128xf32>
    %32 = arith.addf %24, %31 : vector<32x128xf32>
    %33 = arith.mulf %32, %32 : vector<32x128xf32>
    %cst_12 = arith.constant dense<0.000000e+00> : vector<128xf32>
    %34 = vector.multi_reduction <add>, %33, %cst_12 [0] : vector<32x128xf32> to vector<128xf32>
    %35 = vector.shape_cast %34 : vector<128xf32> to vector<1x128xf32>
    %c0_13 = arith.constant 0 : index
    %c0_14 = arith.constant 0 : index
    %36 = vector.load %arg6[%c0_13, %c0_14] : memref<1x128xf32, #tpu.memory_space<vmem>>, vector<1x128xf32>
    tpu.vector_store %arg6[%c0_13, %c0_14], %35 {strides = array<i32>} : memref<1x128xf32, #tpu.memory_space<vmem>>, vector<1x128xf32>,
    %c0_15 = arith.constant 0 : index
    %c0_16 = arith.constant 0 : index
    %37 = vector.load %arg3[%c0_15, %c0_16] : memref<2x256xbf16, #tpu.memory_space<vmem>>, vector<2x256xbf16>
    %c0_17 = arith.constant 0 : index
    %c0_18 = arith.constant 0 : index
    %38 = vector.load %arg4[%c0_17, %c0_18] : memref<256x128xbf16, #tpu.memory_space<vmem>>, vector<256x128xbf16>
    %cst_19 = arith.constant dense<0.000000e+00> : vector<2x128xf32>
    %39 = tpu.matmul %37, %38, %cst_19 {dimension_numbers = #tpu.dot_dimension_numbers<[1], [0], [0], [1], [0, 0, 1, 1], [], []>} : vector<2x256xbf16>, vector<256x128xbf16>, vector<2x128xf32> -> vector<2x128xf32>
    %c0_20 = arith.constant 0 : index
    %c0_21 = arith.constant 0 : index
    %40 = vector.load %arg5[%c0_20, %c0_21] : memref<2x128xf32, #tpu.memory_space<vmem>>, vector<2x128xf32>
    tpu.vector_store %arg5[%c0_20, %c0_21], %39 {strides = array<i32>} : memref<2x128xf32, #tpu.memory_space<vmem>>, vector<2x128xf32>,
    return
  }
  func.func @transform_0(%arg0: i32) -> (i32, i32) {
    %c0_i32 = arith.constant 0 : i32
    %c0_i32_0 = arith.constant 0 : i32
    %c0_i32_1 = arith.constant 0 : i32
    return %c0_i32, %c0_i32_0 : i32, i32
  }
  func.func @transform_1(%arg0: i32) -> (i32, i32) {
    %c0_i32 = arith.constant 0 : i32
    %c0_i32_0 = arith.constant 0 : i32
    %c0_i32_1 = arith.constant 0 : i32
    return %c0_i32, %c0_i32_0 : i32, i32
  }
  func.func @transform_2(%arg0: i32) -> (i32, i32) {
    %c0_i32 = arith.constant 0 : i32
    %c0_i32_0 = arith.constant 0 : i32
    %c0_i32_1 = arith.constant 0 : i32
    return %c0_i32, %c0_i32_0 : i32, i32
  }
  func.func @transform_3(%arg0: i32) -> (i32, i32) {
    %c0_i32 = arith.constant 0 : i32
    %c0_i32_0 = arith.constant 0 : i32
    %c0_i32_1 = arith.constant 0 : i32
    return %c0_i32, %c0_i32_0 : i32, i32
  }
  func.func @transform_4(%arg0: i32) -> (i32, i32) {
    %c0_i32 = arith.constant 0 : i32
    %c0_i32_0 = arith.constant 0 : i32
    %c0_i32_1 = arith.constant 0 : i32
    return %c0_i32, %c0_i32_0 : i32, i32
  }
  func.func @transform_5(%arg0: i32) -> (i32, i32) {
    %c0_i32 = arith.constant 0 : i32
    %c0_i32_0 = arith.constant 0 : i32
    %c0_i32_1 = arith.constant 0 : i32
    return %c0_i32, %c0_i32_0 : i32, i32
  }
}

</mosaic_0001>

<llo_original>
// kernel: tpu_custom_call.1
$region0: #{tpu_custom_call.1}
  #allocation0 [shape = 'u32[]', space=smem, size = 0x4, offset = 0x4, fixed_abs, tag = 'smem constant byte address 0x4 - core index']
  #allocation1 [shape = 'u32[144,128]{1,0:T(1,128)}', space=vmem, size = 0x12000, scoped, tag = 'internal scratch']
  %s0 = inlined_call_operand.vmem [shape: f32[4,128], index: 0, kind: input, shape index: {}]
  %s1 = inlined_call_operand.vmem [shape: f32[32,4], index: 1, kind: input, shape index: {}]
  %s2 = inlined_call_operand.vmem [shape: bf16[2,256], index: 2, kind: input, shape index: {}]
  %s3 = inlined_call_operand.hbm [shape: bf16[256,128], index: 3, kind: input, shape index: {}]
  %s4 = inlined_call_operand.hbm [shape: f32[2,128], index: 4, kind: output, shape index: {0}]
  %s5 = inlined_call_operand.hbm [shape: f32[1,128], index: 5, kind: output, shape index: {1}]
  %6 = xla_tuple %s4, %s5
  %s7 = sld [smem:[#allocation0]]
  $region38: #{tpu_custom_call.1} parent=0
    _
  %s9 = ssub.s32 1, %s7
  %s10 = scalar_select 0, %s9, %s7
  $region1: #{tpu_custom_call.1} parent=0
    #allocation2 [shape = 'u8[65536]{0}', space=vmem, size = 0x10000, scoped, tag = 'input window, operand 3, single buffered']
    #allocation3 [shape = 's32[1]{0}', space=sflag, size = 0x4, scoped, tag = 'scoped memory for tpu_custom_call.1']
    #allocation4 [shape = 's32[1]{0}', space=sflag, size = 0x4, scoped, tag = 'scoped memory for tpu_custom_call.1']
    #allocation5 [shape = 'u8[1024]{0}', space=vmem, size = 0x400, scoped, tag = 'output window, operand 0, single buffered']
    #allocation6 [shape = 'u8[512]{0}', space=vmem, size = 0x400, scoped, tag = 'output window, operand 1, single buffered']
    #allocation7 [shape = 's32[1]{0}', space=sflag, size = 0x4, scoped, tag = 'scoped memory for tpu_custom_call.1']
    %11 = vsyncpa [#allocation3], 0
    %12 = vsyncpa [#allocation4], 0
    %13 = vsyncpa [#allocation7], 0
    // Predicated region
    $region2: #{tpu_custom_call.1} parent=1 // pred_check
      _
    $region3: #{tpu_custom_call.1} parent=1 // pred_check_branch
      %15 = sbr.rel (0) target = $region5
    $region4: #{tpu_custom_call.1} parent=1 // pred_region
      _
    $region5: #{tpu_custom_call.1} parent=1 // pred_fallthru
      _
    // Predicated region
    $region6: #{tpu_custom_call.1} parent=1 // pred_check
      _
    $region7: #{tpu_custom_call.1} parent=1 // pred_check_branch
      %17 = sbr.rel (0) target = $region9
    $region8: #{tpu_custom_call.1} parent=1 // pred_region
      _
    $region9: #{tpu_custom_call.1} parent=1 // pred_fallthru
      _
    // Predicated region
    $region10: #{tpu_custom_call.1} parent=1 // pred_check
      _
    $region11: #{tpu_custom_call.1} parent=1 // pred_check_branch
      %19 = sbr.rel (0) target = $region13
    $region12: #{tpu_custom_call.1} parent=1 // pred_region
      _
    $region13: #{tpu_custom_call.1} parent=1 // pred_fallthru
      _
    // Predicated region
    $region14: #{tpu_custom_call.1} parent=1 // pred_check
      _
    $region15: #{tpu_custom_call.1} parent=1 // pred_check_branch
      %21 = sbr.rel (0) target = $region17
    $region16: #{tpu_custom_call.1} parent=1 // pred_region
      %s23 = ssub.s32 2048, 2048
      %24 = vsyncadd [#allocation3], %s23
      %s25 = sshll.u32 [#allocation2], 4
      %s26 = int_to_ptr.vmem [resolvable:$true] %s25
      %31 = dma.hbm_to_vmem [thread:$0]  %s3, 2048, %s26, [#allocation3], 64, 64, 4
    $region17: #{tpu_custom_call.1} parent=1 // pred_fallthru
      _
    // Predicated region
    $region18: #{tpu_custom_call.1} parent=1 // pred_check
      _
    $region19: #{tpu_custom_call.1} parent=1 // pred_check_branch
      %33 = sbr.rel (0) target = $region21
    $region20: #{tpu_custom_call.1} parent=1 // pred_region
      %34 = dma.done [#allocation3], 2048
    $region21: #{tpu_custom_call.1} parent=1 // pred_fallthru
      _
    %v36 = vld [vmem:[%s1] sm:$0xff]
    %v37 = vld [vmem:[%s1 + $0x8] sm:$0xff]
    %v38 = vld [vmem:[%s1 + $0x10] sm:$0xff]
    %v39 = vld [vmem:[%s1 + $0x18] sm:$0xff]
    %41 = vset.pattern.permute.xlu0 0
    %42 = vperm.xlu0 %41, %v36
    %v43 = vpop.permute.xlu0 %42
    %46 = vset.pattern.permute.xlu0 0
    %47 = vperm.xlu0 %46, %v37
    %v48 = vpop.permute.xlu0 %47
    %51 = vset.pattern.permute.xlu0 0
    %52 = vperm.xlu0 %51, %v38
    %v53 = vpop.permute.xlu0 %52
    %56 = vset.pattern.permute.xlu0 0
    %57 = vperm.xlu0 %56, %v39
    %v58 = vpop.permute.xlu0 %57
    %v60 = vld [vmem:[%s0] sm:$0x1]
    %v61 = vlaneseq
    %v62 = vshrl.u32 %v61, 7
    %v63 = vsub.s32 0, %v62
    %v64 = vrot.slane %v60, %v63
    %v65 = vmul.f32 %v43, %v64
    %v66 = vmul.f32 %v48, %v64
    %v67 = vmul.f32 %v53, %v64
    %v68 = vmul.f32 %v58, %v64
    %v69 = vadd.f32 %v65, 0.0
    %v70 = vadd.f32 %v66, 0.0
    %v71 = vadd.f32 %v67, 0.0
    %v72 = vadd.f32 %v68, 0.0
    %73 = vset.pattern.permute.xlu0 1
    %74 = vperm.xlu0 %73, %v36
    %v75 = vpop.permute.xlu0 %74
    %77 = vset.pattern.permute.xlu0 1
    %78 = vperm.xlu0 %77, %v37
    %v79 = vpop.permute.xlu0 %78
    %81 = vset.pattern.permute.xlu0 1
    %82 = vperm.xlu0 %81, %v38
    %v83 = vpop.permute.xlu0 %82
    %85 = vset.pattern.permute.xlu0 1
    %86 = vperm.xlu0 %85, %v39
    %v87 = vpop.permute.xlu0 %86
    %v89 = vld [vmem:[%s0 + $0x1] sm:$0x1]
    %v90 = vlaneseq
    %v91 = vshrl.u32 %v90, 7
    %v92 = vsub.s32 0, %v91
    %v93 = vrot.slane %v89, %v92
    %v94 = vmul.f32 %v75, %v93
    %v95 = vmul.f32 %v79, %v93
    %v96 = vmul.f32 %v83, %v93
    %v97 = vmul.f32 %v87, %v93
    %v98 = vadd.f32 %v69, %v94
    %v99 = vadd.f32 %v70, %v95
    %v100 = vadd.f32 %v71, %v96
    %v101 = vadd.f32 %v72, %v97
    %102 = vset.pattern.permute.xlu0 2
    %103 = vperm.xlu0 %102, %v36
    %v104 = vpop.permute.xlu0 %103
    %106 = vset.pattern.permute.xlu0 2
    %107 = vperm.xlu0 %106, %v37
    %v108 = vpop.permute.xlu0 %107
    %110 = vset.pattern.permute.xlu0 2
    %111 = vperm.xlu0 %110, %v38
    %v112 = vpop.permute.xlu0 %111
    %114 = vset.pattern.permute.xlu0 2
    %115 = vperm.xlu0 %114, %v39
    %v116 = vpop.permute.xlu0 %115
    %v118 = vld [vmem:[%s0 + $0x2] sm:$0x1]
    %v119 = vlaneseq
    %v120 = vshrl.u32 %v119, 7
    %v121 = vsub.s32 0, %v120
    %v122 = vrot.slane %v118, %v121
    %v123 = vmul.f32 %v104, %v122
    %v124 = vmul.f32 %v108, %v122
    %v125 = vmul.f32 %v112, %v122
    %v126 = vmul.f32 %v116, %v122
    %v127 = vadd.f32 %v98, %v123
    %v128 = vadd.f32 %v99, %v124
    %v129 = vadd.f32 %v100, %v125
    %v130 = vadd.f32 %v101, %v126
    %131 = vset.pattern.permute.xlu0 3
    %132 = vperm.xlu0 %131, %v36
    %v133 = vpop.permute.xlu0 %132
    %135 = vset.pattern.permute.xlu0 3
    %136 = vperm.xlu0 %135, %v37
    %v137 = vpop.permute.xlu0 %136
    %139 = vset.pattern.permute.xlu0 3
    %140 = vperm.xlu0 %139, %v38
    %v141 = vpop.permute.xlu0 %140
    %143 = vset.pattern.permute.xlu0 3
    %144 = vperm.xlu0 %143, %v39
    %v145 = vpop.permute.xlu0 %144
    %v147 = vld [vmem:[%s0 + $0x3] sm:$0x1]
    %v148 = vlaneseq
    %v149 = vshrl.u32 %v148, 7
    %v150 = vsub.s32 0, %v149
    %v151 = vrot.slane %v147, %v150
    %v152 = vmul.f32 %v133, %v151
    %v153 = vmul.f32 %v137, %v151
    %v154 = vmul.f32 %v141, %v151
    %v155 = vmul.f32 %v145, %v151
    %v156 = vadd.f32 %v127, %v152
    %v157 = vadd.f32 %v128, %v153
    %v158 = vadd.f32 %v129, %v154
    %v159 = vadd.f32 %v130, %v155
    %v160 = vmul.f32 %v156, %v156
    %v161 = vmul.f32 %v157, %v157
    %v162 = vmul.f32 %v158, %v158
    %v163 = vmul.f32 %v159, %v159
    %v164 = vadd.f32 %v160, %v161
    %v165 = vadd.f32 %v164, %v162
    %v166 = vadd.f32 %v165, %v163
    %v167 = vrot.slane %v166, 4
    %v168 = vadd.f32 %v166, %v167
    %v169 = vrot.slane %v168, 2
    %v170 = vadd.f32 %v168, %v169
    %v171 = vrot.slane %v170, 1
    %v172 = vadd.f32 %v170, %v171
    %173 = vst [vmem:[#allocation6] sm:$0x1] %v172
    %v174 = vld [vmem:[%s2] sm:$0x3]
    %v175 = vld [vmem:[#allocation2] sm:$0xf]
    %v176 = vld [vmem:[#allocation2 + $0x4] sm:$0xf]
    %v177 = vld [vmem:[#allocation2 + $0x8] sm:$0xf]
    %v178 = vld [vmem:[#allocation2 + $0xc] sm:$0xf]
    %v179 = vld [vmem:[#allocation2 + $0x10] sm:$0xf]
    %v180 = vld [vmem:[#allocation2 + $0x14] sm:$0xf]
    %v181 = vld [vmem:[#allocation2 + $0x18] sm:$0xf]
    %v182 = vld [vmem:[#allocation2 + $0x1c] sm:$0xf]
    %v183 = vld [vmem:[#allocation2 + $0x20] sm:$0xf]
    %v184 = vld [vmem:[#allocation2 + $0x24] sm:$0xf]
    %v185 = vld [vmem:[#allocation2 + $0x28] sm:$0xf]
    %v186 = vld [vmem:[#allocation2 + $0x2c] sm:$0xf]
    %v187 = vld [vmem:[#allocation2 + $0x30] sm:$0xf]
    %v188 = vld [vmem:[#allocation2 + $0x34] sm:$0xf]
    %v189 = vld [vmem:[#allocation2 + $0x38] sm:$0xf]
    %v190 = vld [vmem:[#allocation2 + $0x3c] sm:$0xf]
    %v191 = vld [vmem:[#allocation2 + $0x40] sm:$0xf]
    %v192 = vld [vmem:[#allocation2 + $0x44] sm:$0xf]
    %v193 = vld [vmem:[#allocation2 + $0x48] sm:$0xf]
    %v194 = vld [vmem:[#allocation2 + $0x4c] sm:$0xf]
    %v195 = vld [vmem:[#allocation2 + $0x50] sm:$0xf]
    %v196 = vld [vmem:[#allocation2 + $0x54] sm:$0xf]
    %v197 = vld [vmem:[#allocation2 + $0x58] sm:$0xf]
    %v198 = vld [vmem:[#allocation2 + $0x5c] sm:$0xf]
    %v199 = vld [vmem:[#allocation2 + $0x60] sm:$0xf]
    %v200 = vld [vmem:[#allocation2 + $0x64] sm:$0xf]
    %v201 = vld [vmem:[#allocation2 + $0x68] sm:$0xf]
    %v202 = vld [vmem:[#allocation2 + $0x6c] sm:$0xf]
    %v203 = vld [vmem:[#allocation2 + $0x70] sm:$0xf]
    %v204 = vld [vmem:[#allocation2 + $0x74] sm:$0xf]
    %v205 = vld [vmem:[#allocation2 + $0x78] sm:$0xf]
    %v206 = vld [vmem:[#allocation2 + $0x7c] sm:$0xf]
    %v209 = vunpack.c.l.s4 1966171168
    %v210 = vunpack.c.0.s8 %v209
    %v211 = vlaneseq
    %v212 = vshrl.u32 %v211, 7
    %v213 = vsub.s32 %v210, %v212
    %v214 = vrot.slane %v174, %v213
    %v215 = vcombine.high %v214, %v214
    %v217 = vunpack.c.l.s4 1966171168
    %v218 = vunpack.c.0.s8 %v217
    %v219 = vlaneseq
    %v220 = vshrl.u32 %v219, 7
    %v221 = vsub.s32 %v218, %v220
    %v222 = vrot.slane %v214, %v221
    %v224 = vunpack.c.l.s4 1966171168
    %v225 = vunpack.c.0.s8 %v224
    %v226 = vlaneseq
    %v227 = vshrl.u32 %v226, 7
    %v228 = vsub.s32 %v225, %v227
    %v229 = vrot.slane %v215, %v228
    %v264 = vunpack.c.l.b16 %v175
    %v265 = vunpack.c.l.b16 %v176
    %v266 = vunpack.c.l.b16 %v177
    %v267 = vunpack.c.l.b16 %v178
    %v268 = vunpack.c.l.b16 %v179
    %v269 = vunpack.c.l.b16 %v180
    %v270 = vunpack.c.l.b16 %v181
    %v271 = vunpack.c.l.b16 %v182
    %v272 = vunpack.c.l.b16 %v183
    %v273 = vunpack.c.l.b16 %v184
    %v274 = vunpack.c.l.b16 %v185
    %v275 = vunpack.c.l.b16 %v186
    %v276 = vunpack.c.l.b16 %v187
    %v277 = vunpack.c.l.b16 %v188
    %v278 = vunpack.c.l.b16 %v189
    %v279 = vunpack.c.l.b16 %v190
    %v280 = vunpack.c.l.b16 %v191
    %v281 = vunpack.c.l.b16 %v192
    %v282 = vunpack.c.l.b16 %v193
    %v283 = vunpack.c.l.b16 %v194
    %v284 = vunpack.c.l.b16 %v195
    %v285 = vunpack.c.l.b16 %v196
    %v286 = vunpack.c.l.b16 %v197
    %v287 = vunpack.c.l.b16 %v198
    %v288 = vunpack.c.l.b16 %v199
    %v289 = vunpack.c.l.b16 %v200
    %v290 = vunpack.c.l.b16 %v201
    %v291 = vunpack.c.l.b16 %v202
    %v292 = vunpack.c.l.b16 %v203
    %v293 = vunpack.c.l.b16 %v204
    %v294 = vunpack.c.l.b16 %v205
    %v295 = vunpack.c.l.b16 %v206
    %v296 = vpack.c.b16 %v265, %v264
    %v297 = vpack.c.b16 %v267, %v266
    %v298 = vpack.c.b16 %v269, %v268
    %v299 = vpack.c.b16 %v271, %v270
    %v300 = vpack.c.b16 %v273, %v272
    %v301 = vpack.c.b16 %v275, %v274
    %v302 = vpack.c.b16 %v277, %v276
    %v303 = vpack.c.b16 %v279, %v278
    %v304 = vpack.c.b16 %v281, %v280
    %v305 = vpack.c.b16 %v283, %v282
    %v306 = vpack.c.b16 %v285, %v284
    %v307 = vpack.c.b16 %v287, %v286
    %v308 = vpack.c.b16 %v289, %v288
    %v309 = vpack.c.b16 %v291, %v290
    %v310 = vpack.c.b16 %v293, %v292
    %v311 = vpack.c.b16 %v295, %v294
    %328 = vmatprep.subr.bf16.mxu0 0
    %329 = vmatpush1.bf16.msra.mxu0 %v303
    %330 = vmatprep.subr.bf16.mxu0 0
    %331 = vmatpush1.bf16.msra.mxu0 %v302
    %332 = vmatprep.subr.bf16.mxu0 0
    %333 = vmatpush1.bf16.msra.mxu0 %v301
    %334 = vmatprep.subr.bf16.mxu0 0
    %335 = vmatpush1.bf16.msra.mxu0 %v300
    %336 = vmatprep.subr.bf16.mxu0 0
    %337 = vmatpush1.bf16.msra.mxu0 %v299
    %338 = vmatprep.subr.bf16.mxu0 0
    %339 = vmatpush1.bf16.msra.mxu0 %v298
    %340 = vmatprep.subr.bf16.mxu0 0
    %341 = vmatpush1.bf16.msra.mxu0 %v297
    %342 = vmatprep.subr.bf16.mxu0 0
    %343 = vmatpush1.bf16.msra.mxu0 %v296
    %344 = vmatprep.subr.bf16.mxu0 0
    %345 = vmatpush2.bf16.msra.mxu0 %v311
    %346 = vmatprep.subr.bf16.mxu0 0
    %347 = vmatpush2.bf16.msra.mxu0 %v310
    %348 = vmatprep.subr.bf16.mxu0 0
    %349 = vmatpush2.bf16.msra.mxu0 %v309
    %350 = vmatprep.subr.bf16.mxu0 0
    %351 = vmatpush2.bf16.msra.mxu0 %v308
    %352 = vmatprep.subr.bf16.mxu0 0
    %353 = vmatpush2.bf16.msra.mxu0 %v307
    %354 = vmatprep.subr.bf16.mxu0 0
    %355 = vmatpush2.bf16.msra.mxu0 %v306
    %356 = vmatprep.subr.bf16.mxu0 0
    %357 = vmatpush2.bf16.msra.mxu0 %v305
    %358 = vmatprep.subr.bf16.mxu0 0
    %359 = vmatpush2.bf16.msra.mxu0 %v304
    %360 = vmatprep.mubr.bf16.mxu0 %v229
    %361 = vmatmul.mubr.bf16.gmra.mxu0 %v222
    %v362 = vpop.f32.mrf.mxu0
    %v363 = vadd.f32 0.0, %v362
    %v364 = vpop.f32.mrf.mxu0
    %v365 = vpop.f32.mrf.mxu0
    %v366 = vpop.f32.mrf.mxu0
    %367 = vdwg.mxu0
    %368 = vst [vmem:[#allocation5] sm:$0x3] %v363
    // Predicated region
    $region22: #{tpu_custom_call.1} parent=1 // pred_check
      _
    $region23: #{tpu_custom_call.1} parent=1 // pred_check_branch
      %370 = sbr.rel (0) target = $region25
    $region24: #{tpu_custom_call.1} parent=1 // pred_region
      %s372 = ssub.s32 32, 32
      %373 = vsyncadd [#allocation4], %s372
      %s375 = sshll.u32 [#allocation5], 4
      %s376 = int_to_ptr.vmem [resolvable:$true] %s375
      %378 = dma.vmem_to_hbm [thread:$0]  %s376, 32, %s4, [#allocation4]
    $region25: #{tpu_custom_call.1} parent=1 // pred_fallthru
      _
    // Predicated region
    $region26: #{tpu_custom_call.1} parent=1 // pred_check
      _
    $region27: #{tpu_custom_call.1} parent=1 // pred_check_branch
      %380 = sbr.rel (0) target = $region29
    $region28: #{tpu_custom_call.1} parent=1 // pred_region
      %s382 = ssub.s32 16, 16
      %383 = vsyncadd [#allocation7], %s382
      %s385 = sshll.u32 [#allocation6], 4
      %s386 = int_to_ptr.vmem [resolvable:$true] %s385
      %388 = dma.vmem_to_hbm [thread:$0]  %s386, 16, %s5, [#allocation7]
    $region29: #{tpu_custom_call.1} parent=1 // pred_fallthru
      _
    // Predicated region
    $region30: #{tpu_custom_call.1} parent=1 // pred_check
      _
    $region31: #{tpu_custom_call.1} parent=1 // pred_check_branch
      %390 = sbr.rel (0) target = $region33
    $region32: #{tpu_custom_call.1} parent=1 // pred_region
      %391 = dma.done [#allocation4], 32
    $region33: #{tpu_custom_call.1} parent=1 // pred_fallthru
      _
    // Predicated region
    $region34: #{tpu_custom_call.1} parent=1 // pred_check
      _
    $region35: #{tpu_custom_call.1} parent=1 // pred_check_branch
      %393 = sbr.rel (0) target = $region37
    $region36: #{tpu_custom_call.1} parent=1 // pred_region
      %394 = dma.done [#allocation7], 16
    $region37: #{tpu_custom_call.1} parent=1 // pred_fallthru
      _
    %395 = vsyncpa [#allocation3], 1
    %396 = vsyncpa [#allocation4], 1
    %397 = vsyncpa [#allocation7], 1

</llo_original>
